<compile_context>
chip_gen: v7x
topology: tpu7x:2x2x1
jax: 0.10.0
libtpu: 0.0.40
codegen_flags: <defaults>
</compile_context>

<pallas_src>
import functools

import numpy as np
import jax
import jax.numpy as jnp
from jax import lax
from jax.experimental import pallas as pl
from jax.experimental.pallas import tpu as pltpu

# ----------------------------- module hyper-params -----------------------------
SHAPE = 128          # signal length N
J = 3                # number of octaves
Q1 = 4               # wavelets per octave (first order)
MAX_ORDER = 1
P = 2.0              # norm order
BATCH = 2

K = J * Q1                   # number of first-order filters
T_OUT = SHAPE >> J           # output temporal resolution after 2^J downsampling
EPS = 1e-12


# --------------------------- deterministic filter bank -------------------------
def make_scattering_params(N: int, J: int, Q1: int):
    """Returns (F_cat, Finv_block, psi_hat, phi) for the shared-DFT formulation.

    F_cat      : (N, 2N)  bf16   [Fr | Fi], forward DFT split re/im
    Finv_block : (2N, 2N) bf16   complex IDFT as a real block matrix
                 [ur | ui] = [Yr | Yi] @ [[FinvR, FinvI], [-FinvI, FinvR]]
    psi_hat    : (K, N)   f32    per-filter spectral masks
    phi        : (N, T_out) bf16 circular Gaussian lowpass + downsample-by-2^J
    """
    n = np.arange(N)
    omega = 2.0 * np.pi * n / N
    ang = 2.0 * np.pi * np.outer(n, n) / N

    Fr = np.cos(ang)                      # Re exp(-2pi i nm/N)
    Fi = -np.sin(ang)                     # Im exp(-2pi i nm/N)
    FinvR = np.cos(ang) / N               # Re exp(+2pi i nm/N)/N
    FinvI = np.sin(ang) / N               # Im exp(+2pi i nm/N)/N

    F_cat = np.concatenate([Fr, Fi], axis=1)                         # (N, 2N)
    Finv_block = np.block([[FinvR, FinvI],
                           [-FinvI, FinvR]])                         # (2N, 2N)

    Kf = J * Q1
    psi = np.zeros((Kf, N), dtype=np.float64)
    for k in range(Kf):
        xi_k = 0.8 * np.pi * 2.0 ** (-(k) / Q1)       # geometric center frequencies
        sigma_k = xi_k / (2.0 * Q1)                   # constant-Q bandwidth
        psi[k] = np.exp(-((omega - xi_k) ** 2) / (2.0 * sigma_k ** 2))

    T_out = N >> J
    centers = np.arange(T_out) * (1 << J)
    d = (n[:, None] - centers[None, :]) % N
    d = np.minimum(d, N - d).astype(np.float64)
    sigma_phi = (1 << J) * 0.5
    phi = np.exp(-0.5 * (d / sigma_phi) ** 2)
    phi = phi / phi.sum(axis=0, keepdims=True)

    return (jnp.asarray(F_cat, dtype=jnp.bfloat16),
            jnp.asarray(Finv_block, dtype=jnp.bfloat16),
            jnp.asarray(psi, dtype=jnp.float32),
            jnp.asarray(phi, dtype=jnp.bfloat16))


# --------------------------------- Pallas kernel --------------------------------
def _scat_loss_kernel(z_ref, fdft_ref, finv_ref, psi_ref, phi_ref, out_ref,
                      *, batch, n_filters):
    B = batch
    Kf = n_filters
    N = z_ref.shape[1]
    two_b = 2 * B          # stacked signals (x batch then x_target batch)
    bk = B * Kf            # rows per signal-group after filter replication

    z = z_ref[...]                                                       # (2B, N) bf16

    # one shared complex DFT of all signals: [Zr | Zi] = z @ [Fr | Fi]
    z_spec = jnp.dot(z, fdft_ref[...],
                     preferred_element_type=jnp.float32)                 # (2B, 2N) f32

    # replicate each spectrum K times (row r = s*K + k) via a tiny selector matmul
    rr = lax.broadcasted_iota(jnp.int32, (2 * bk, two_b), 0)
    rc = lax.broadcasted_iota(jnp.int32, (2 * bk, two_b), 1)
    rep = ((rr >= rc * Kf) & (rr < (rc + 1) * Kf)).astype(jnp.float32)   # (2BK, 2B)
    z_rep = jnp.dot(rep, z_spec,
                    preferred_element_type=jnp.float32)                  # (2BK, 2N) f32

    # band-pass: elementwise multiply by psi_hat (same mask on re & im halves)
    y = (z_rep * psi_ref[...]).astype(jnp.bfloat16)                      # (2BK, 2N) bf16

    # complex inverse DFT as one wide real block matmul -> [ur | ui]
    uv = jnp.dot(y, finv_ref[...],
                 preferred_element_type=jnp.float32)                     # (2BK, 2N) f32
    ur = uv[:, :N]
    ui = uv[:, N:]
    u = jnp.sqrt(ur * ur + ui * ui + EPS)                                # modulus (2BK, N)

    # lowpass + downsample -> order-1 scattering coefficients
    s = jnp.dot(u.astype(jnp.bfloat16), phi_ref[...],
                preferred_element_type=jnp.float32)                      # (2BK, T_out)

    # diff target - input (row blocks are 8-sublane aligned: bk = B*K)
    d = s[bk:, :] - s[:bk, :]                                            # (BK, T_out)
    if P == 2.0:
        d = d * d
    else:
        d = jnp.abs(d) ** P

    # per-batch sum over filters (selector matmul) then over time (lane reduce)
    sr = lax.broadcasted_iota(jnp.int32, (B, bk), 0)
    sc = lax.broadcasted_iota(jnp.int32, (B, bk), 1)
    sel = ((sc >= sr * Kf) & (sc < (sr + 1) * Kf)).astype(jnp.float32)   # (B, BK)
    acc = jnp.dot(sel, d, preferred_element_type=jnp.float32)            # (B, T_out)
    out_ref[...] = jnp.sum(acc, axis=-1, keepdims=True)                  # (B, 1)


def scat1d_loss(x, x_target, params):
    """x, x_target: (B, 1, N) float32.  Returns scalar loss."""
    assert x.ndim == 3 and x_target.ndim == 3
    assert x.shape[1] == 1 and x_target.shape[1] == 1
    f_cat, finv_block, psi, phi = params
    B, _, N = x.shape
    Kf = psi.shape[0]
    T_out = phi.shape[1]

    # stack x and x_target into one lane-dense LHS
    z = jnp.concatenate([x[:, 0, :], x_target[:, 0, :]], axis=0).astype(jnp.bfloat16)
    # tiled band-pass masks: row s*K+k -> psi[k], duplicated over [re | im] halves
    psi_cat = jnp.tile(psi, (2 * B, 2))                                  # (2BK, 2N) f32

    kernel = functools.partial(_scat_loss_kernel, batch=B, n_filters=Kf)

    out = pl.pallas_call(
        kernel,
        out_shape=jax.ShapeDtypeStruct((B, 1), jnp.float32),
        grid_spec=pltpu.PrefetchScalarGridSpec(
            num_scalar_prefetch=0,
            grid=(1,),
            in_specs=[
                pl.BlockSpec((2 * B, N), lambda i: (0, 0)),
                pl.BlockSpec((N, 2 * N), lambda i: (0, 0)),
                pl.BlockSpec((2 * N, 2 * N), lambda i: (0, 0)),
                pl.BlockSpec((2 * B * Kf, 2 * N), lambda i: (0, 0)),
                pl.BlockSpec((N, T_out), lambda i: (0, 0)),
            ],
            out_specs=pl.BlockSpec((B, 1), lambda i: (0, 0)),
        ),
        compiler_params=pltpu.CompilerParams(
            dimension_semantics=("arbitrary",),
        ),
    )(z, f_cat, finv_block, psi_cat, phi)

    # out[b] = sum_{k,t} |S1_k(x_target)[b,t] - S1_k(x)[b,t]|^p
    dist = (out[:, 0] + EPS) ** (1.0 / P)      # per-batch p-norm over (coeff, time)
    return jnp.mean(dist)


# ------------------------------------- main --------------------------------------
if __name__ == "__main__":
    params = make_scattering_params(SHAPE, J, Q1)

    key = jax.random.PRNGKey(0)
    k1, k2 = jax.random.split(key)
    x = jax.random.normal(k1, (BATCH, 1, SHAPE), dtype=jnp.float32)
    x_target = jax.random.normal(k2, (BATCH, 1, SHAPE), dtype=jnp.float32)

    loss = jax.jit(lambda a, b: scat1d_loss(a, b, params))(x, x_target)
    loss = jax.block_until_ready(loss)
    assert loss.shape == () and jnp.isfinite(loss)
    print("KERNEL_OK")
</pallas_src>

<mosaic_0001>
module attributes {stable_mosaic.version = 11 : i64} {
  func.func @_scat_loss_kernel(%arg0: i32, %arg1: memref<4x128xbf16, #tpu.memory_space<vmem>>, %arg2: memref<128x256xbf16, #tpu.memory_space<vmem>>, %arg3: memref<256x256xbf16, #tpu.memory_space<vmem>>, %arg4: memref<48x256xf32, #tpu.memory_space<vmem>>, %arg5: memref<128x16xbf16, #tpu.memory_space<vmem>>, %arg6: memref<2x1xf32, #tpu.memory_space<vmem>>) attributes {dimension_semantics = [#tpu.dimension_semantics<arbitrary>], iteration_bounds = array<i64: 1>, scalar_prefetch = 0 : i64, scratch_operands = 0 : i64, tpu.core_type = #tpu.core_type<tc>, window_params = [{pipeline_mode = #tpu.pipeline_mode<synchronous>, transform_indices = @transform_0, window_bounds = array<i64: 4, 128>}, {pipeline_mode = #tpu.pipeline_mode<synchronous>, transform_indices = @transform_1, window_bounds = array<i64: 128, 256>}, {pipeline_mode = #tpu.pipeline_mode<synchronous>, transform_indices = @transform_2, window_bounds = array<i64: 256, 256>}, {pipeline_mode = #tpu.pipeline_mode<synchronous>, transform_indices = @transform_3, window_bounds = array<i64: 48, 256>}, {pipeline_mode = #tpu.pipeline_mode<synchronous>, transform_indices = @transform_4, window_bounds = array<i64: 128, 16>}, {pipeline_mode = #tpu.pipeline_mode<synchronous>, transform_indices = @transform_5, window_bounds = array<i64: 2, 1>}]} {
    %c0 = arith.constant 0 : index
    %c0_0 = arith.constant 0 : index
    %0 = vector.load %arg1[%c0, %c0_0] : memref<4x128xbf16, #tpu.memory_space<vmem>>, vector<4x128xbf16>
    %c0_1 = arith.constant 0 : index
    %c0_2 = arith.constant 0 : index
    %1 = vector.load %arg2[%c0_1, %c0_2] : memref<128x256xbf16, #tpu.memory_space<vmem>>, vector<128x256xbf16>
    %cst = arith.constant dense<0.000000e+00> : vector<4x256xf32>
    %2 = tpu.matmul %0, %1, %cst {dimension_numbers = #tpu.dot_dimension_numbers<[1], [0], [0], [1], [0, 0, 1, 1], [], []>} : vector<4x128xbf16>, vector<128x256xbf16>, vector<4x256xf32> -> vector<4x256xf32>
    %3 = tpu.iota {dimensions = array<i32: 0>} : vector<48x4xi32>
    %4 = tpu.iota {dimensions = array<i32: 1>} : vector<48x4xi32>
    %c12_i32 = arith.constant 12 : i32
    %5 = vector.broadcast %c12_i32 : i32 to vector<48x4xi32>
    %6 = arith.muli %4, %5 : vector<48x4xi32>
    %7 = arith.cmpi sge, %3, %6 : vector<48x4xi32>
    %c1_i32 = arith.constant 1 : i32
    %8 = vector.broadcast %c1_i32 : i32 to vector<48x4xi32>
    %9 = arith.addi %4, %8 : vector<48x4xi32>
    %c12_i32_3 = arith.constant 12 : i32
    %10 = vector.broadcast %c12_i32_3 : i32 to vector<48x4xi32>
    %11 = arith.muli %9, %10 : vector<48x4xi32>
    %12 = arith.cmpi slt, %3, %11 : vector<48x4xi32>
    %13 = arith.andi %7, %12 : vector<48x4xi1>
    %14 = arith.extui %13 : vector<48x4xi1> to vector<48x4xi32>
    %15 = arith.sitofp %14 : vector<48x4xi32> to vector<48x4xf32>
    %cst_4 = arith.constant dense<0.000000e+00> : vector<48x256xf32>
    %16 = tpu.matmul %15, %2, %cst_4 {dimension_numbers = #tpu.dot_dimension_numbers<[1], [0], [0], [1], [0, 0, 1, 1], [], []>} : vector<48x4xf32>, vector<4x256xf32>, vector<48x256xf32> -> vector<48x256xf32>
    %c0_5 = arith.constant 0 : index
    %c0_6 = arith.constant 0 : index
    %17 = vector.load %arg4[%c0_5, %c0_6] : memref<48x256xf32, #tpu.memory_space<vmem>>, vector<48x256xf32>
    %18 = arith.mulf %16, %17 : vector<48x256xf32>
    %19 = arith.truncf %18 : vector<48x256xf32> to vector<48x256xbf16>
    %c0_7 = arith.constant 0 : index
    %c0_8 = arith.constant 0 : index
    %20 = vector.load %arg3[%c0_7, %c0_8] : memref<256x256xbf16, #tpu.memory_space<vmem>>, vector<256x256xbf16>
    %cst_9 = arith.constant dense<0.000000e+00> : vector<48x256xf32>
    %21 = tpu.matmul %19, %20, %cst_9 {dimension_numbers = #tpu.dot_dimension_numbers<[1], [0], [0], [1], [0, 0, 1, 1], [], []>} : vector<48x256xbf16>, vector<256x256xbf16>, vector<48x256xf32> -> vector<48x256xf32>
    %22 = vector.extract_strided_slice %21 {offsets = [0, 0], sizes = [48, 128], strides = [1, 1]} : vector<48x256xf32> to vector<48x128xf32>
    %23 = vector.extract_strided_slice %21 {offsets = [0, 128], sizes = [48, 128], strides = [1, 1]} : vector<48x256xf32> to vector<48x128xf32>
    %24 = arith.mulf %22, %22 : vector<48x128xf32>
    %25 = arith.mulf %23, %23 : vector<48x128xf32>
    %26 = arith.addf %24, %25 : vector<48x128xf32>
    %cst_10 = arith.constant 9.99999996E-13 : f32
    %27 = vector.broadcast %cst_10 : f32 to vector<48x128xf32>
    %28 = arith.addf %26, %27 : vector<48x128xf32>
    %29 = math.sqrt %28 : vector<48x128xf32>
    %30 = arith.truncf %29 : vector<48x128xf32> to vector<48x128xbf16>
    %c0_11 = arith.constant 0 : index
    %c0_12 = arith.constant 0 : index
    %31 = vector.load %arg5[%c0_11, %c0_12] : memref<128x16xbf16, #tpu.memory_space<vmem>>, vector<128x16xbf16>
    %cst_13 = arith.constant dense<0.000000e+00> : vector<48x16xf32>
    %32 = tpu.matmul %30, %31, %cst_13 {dimension_numbers = #tpu.dot_dimension_numbers<[1], [0], [0], [1], [0, 0, 1, 1], [], []>} : vector<48x128xbf16>, vector<128x16xbf16>, vector<48x16xf32> -> vector<48x16xf32>
    %33 = vector.extract_strided_slice %32 {offsets = [24, 0], sizes = [24, 16], strides = [1, 1]} : vector<48x16xf32> to vector<24x16xf32>
    %34 = vector.extract_strided_slice %32 {offsets = [0, 0], sizes = [24, 16], strides = [1, 1]} : vector<48x16xf32> to vector<24x16xf32>
    %35 = arith.subf %33, %34 : vector<24x16xf32>
    %36 = arith.mulf %35, %35 : vector<24x16xf32>
    %37 = tpu.iota {dimensions = array<i32: 0>} : vector<2x24xi32>
    %38 = tpu.iota {dimensions = array<i32: 1>} : vector<2x24xi32>
    %c12_i32_14 = arith.constant 12 : i32
    %39 = vector.broadcast %c12_i32_14 : i32 to vector<2x24xi32>
    %40 = arith.muli %37, %39 : vector<2x24xi32>
    %41 = arith.cmpi sge, %38, %40 : vector<2x24xi32>
    %c1_i32_15 = arith.constant 1 : i32
    %42 = vector.broadcast %c1_i32_15 : i32 to vector<2x24xi32>
    %43 = arith.addi %37, %42 : vector<2x24xi32>
    %c12_i32_16 = arith.constant 12 : i32
    %44 = vector.broadcast %c12_i32_16 : i32 to vector<2x24xi32>
    %45 = arith.muli %43, %44 : vector<2x24xi32>
    %46 = arith.cmpi slt, %38, %45 : vector<2x24xi32>
    %47 = arith.andi %41, %46 : vector<2x24xi1>
    %48 = arith.extui %47 : vector<2x24xi1> to vector<2x24xi32>
    %49 = arith.sitofp %48 : vector<2x24xi32> to vector<2x24xf32>
    %cst_17 = arith.constant dense<0.000000e+00> : vector<2x16xf32>
    %50 = tpu.matmul %49, %36, %cst_17 {dimension_numbers = #tpu.dot_dimension_numbers<[1], [0], [0], [1], [0, 0, 1, 1], [], []>} : vector<2x24xf32>, vector<24x16xf32>, vector<2x16xf32> -> vector<2x16xf32>
    %cst_18 = arith.constant dense<0.000000e+00> : vector<2xf32>
    %51 = vector.multi_reduction <add>, %50, %cst_18 [1] : vector<2x16xf32> to vector<2xf32>
    %52 = vector.shape_cast %51 : vector<2xf32> to vector<2x1xf32>
    %c0_19 = arith.constant 0 : index
    %c0_20 = arith.constant 0 : index
    %53 = vector.load %arg6[%c0_19, %c0_20] : memref<2x1xf32, #tpu.memory_space<vmem>>, vector<2x1xf32>
    tpu.vector_store %arg6[%c0_19, %c0_20], %52 {strides = array<i32>} : memref<2x1xf32, #tpu.memory_space<vmem>>, vector<2x1xf32>,
    return
  }
  func.func @transform_0(%arg0: i32) -> (i32, i32) {
    %c0_i32 = arith.constant 0 : i32
    %c0_i32_0 = arith.constant 0 : i32
    %c0_i32_1 = arith.constant 0 : i32
    return %c0_i32, %c0_i32_0 : i32, i32
  }
  func.func @transform_1(%arg0: i32) -> (i32, i32) {
    %c0_i32 = arith.constant 0 : i32
    %c0_i32_0 = arith.constant 0 : i32
    %c0_i32_1 = arith.constant 0 : i32
    return %c0_i32, %c0_i32_0 : i32, i32
  }
  func.func @transform_2(%arg0: i32) -> (i32, i32) {
    %c0_i32 = arith.constant 0 : i32
    %c0_i32_0 = arith.constant 0 : i32
    %c0_i32_1 = arith.constant 0 : i32
    return %c0_i32, %c0_i32_0 : i32, i32
  }
  func.func @transform_3(%arg0: i32) -> (i32, i32) {
    %c0_i32 = arith.constant 0 : i32
    %c0_i32_0 = arith.constant 0 : i32
    %c0_i32_1 = arith.constant 0 : i32
    return %c0_i32, %c0_i32_0 : i32, i32
  }
  func.func @transform_4(%arg0: i32) -> (i32, i32) {
    %c0_i32 = arith.constant 0 : i32
    %c0_i32_0 = arith.constant 0 : i32
    %c0_i32_1 = arith.constant 0 : i32
    return %c0_i32, %c0_i32_0 : i32, i32
  }
  func.func @transform_5(%arg0: i32) -> (i32, i32) {
    %c0_i32 = arith.constant 0 : i32
    %c0_i32_0 = arith.constant 0 : i32
    %c0_i32_1 = arith.constant 0 : i32
    return %c0_i32, %c0_i32_0 : i32, i32
  }
}

</mosaic_0001>

<llo_original>
// kernel: tile.6
$region0: #{tile.6}
  #allocation0 [shape = 's32[1]{0}', space=sflag, size = 0x4, scoped, tag = 'scoped memory for tile.6']
  %s0 = inlined_call_operand.vmem [shape: f32[12,128], index: 0, kind: input, shape index: {}]
  %s1 = inlined_call_operand.vmem [shape: f32[4,12,2,128], index: 1, kind: output, shape index: {}]
  // Predicated region
  $region2: #{tile.6} parent=0 // pred_check
    _
  $region3: #{tile.6} parent=0 // pred_check_branch
    %3 = sbr.rel (0) target = $region5
  $region4: #{tile.6} parent=0 // pred_region
    _
  $region5: #{tile.6} parent=0 // pred_fallthru
    _
  %v4 = vld [vmem:[%s0] ss:$0 sm:$0xff]
  %5 = vst [vmem:[%s1] sm:$0x3] %v4
  %s6 = scalar_lea.vmem %s1, 24
  %7 = vst [vmem:[%s6] sm:$0x3] %v4
  %s8 = scalar_lea.vmem %s1, 48
  %9 = vst [vmem:[%s8] sm:$0x3] %v4
  %s10 = scalar_lea.vmem %s1, 72
  %11 = vst [vmem:[%s10] sm:$0x3] %v4
  %s12 = scalar_lea.vmem %s0, 1
  %v13 = vld [vmem:[%s12] ss:$0 sm:$0xff]
  %s14 = scalar_lea.vmem %s1, 2
  %15 = vst [vmem:[%s14] sm:$0x3] %v13
  %s16 = scalar_lea.vmem %s1, 26
  %17 = vst [vmem:[%s16] sm:$0x3] %v13
  %s18 = scalar_lea.vmem %s1, 50
  %19 = vst [vmem:[%s18] sm:$0x3] %v13
  %s20 = scalar_lea.vmem %s1, 74
  %21 = vst [vmem:[%s20] sm:$0x3] %v13
  %s22 = scalar_lea.vmem %s0, 2
  %v23 = vld [vmem:[%s22] ss:$0 sm:$0xff]
  %s24 = scalar_lea.vmem %s1, 4
  %25 = vst [vmem:[%s24] sm:$0x3] %v23
  %s26 = scalar_lea.vmem %s1, 28
  %27 = vst [vmem:[%s26] sm:$0x3] %v23
  %s28 = scalar_lea.vmem %s1, 52
  %29 = vst [vmem:[%s28] sm:$0x3] %v23
  %s30 = scalar_lea.vmem %s1, 76
  %31 = vst [vmem:[%s30] sm:$0x3] %v23
  %s32 = scalar_lea.vmem %s0, 3
  %v33 = vld [vmem:[%s32] ss:$0 sm:$0xff]
  %s34 = scalar_lea.vmem %s1, 6
  %35 = vst [vmem:[%s34] sm:$0x3] %v33
  %s36 = scalar_lea.vmem %s1, 30
  %37 = vst [vmem:[%s36] sm:$0x3] %v33
  %s38 = scalar_lea.vmem %s1, 54
  %39 = vst [vmem:[%s38] sm:$0x3] %v33
  %s40 = scalar_lea.vmem %s1, 78
  %41 = vst [vmem:[%s40] sm:$0x3] %v33
  %s42 = scalar_lea.vmem %s0, 4
  %v43 = vld [vmem:[%s42] ss:$0 sm:$0xff]
  %s44 = scalar_lea.vmem %s1, 8
  %45 = vst [vmem:[%s44] sm:$0x3] %v43
  %s46 = scalar_lea.vmem %s1, 32
  %47 = vst [vmem:[%s46] sm:$0x3] %v43
  %s48 = scalar_lea.vmem %s1, 56
  %49 = vst [vmem:[%s48] sm:$0x3] %v43
  %s50 = scalar_lea.vmem %s1, 80
  %51 = vst [vmem:[%s50] sm:$0x3] %v43
  %s52 = scalar_lea.vmem %s0, 5
  %v53 = vld [vmem:[%s52] ss:$0 sm:$0xff]
  %s54 = scalar_lea.vmem %s1, 10
  %55 = vst [vmem:[%s54] sm:$0x3] %v53
  %s56 = scalar_lea.vmem %s1, 34
  %57 = vst [vmem:[%s56] sm:$0x3] %v53
  %s58 = scalar_lea.vmem %s1, 58
  %59 = vst [vmem:[%s58] sm:$0x3] %v53
  %s60 = scalar_lea.vmem %s1, 82
  %61 = vst [vmem:[%s60] sm:$0x3] %v53
  %s62 = scalar_lea.vmem %s0, 6
  %v63 = vld [vmem:[%s62] ss:$0 sm:$0xff]
  %s64 = scalar_lea.vmem %s1, 12
  %65 = vst [vmem:[%s64] sm:$0x3] %v63
  %s66 = scalar_lea.vmem %s1, 36
  %67 = vst [vmem:[%s66] sm:$0x3] %v63
  %s68 = scalar_lea.vmem %s1, 60
  %69 = vst [vmem:[%s68] sm:$0x3] %v63
  %s70 = scalar_lea.vmem %s1, 84
  %71 = vst [vmem:[%s70] sm:$0x3] %v63
  %s72 = scalar_lea.vmem %s0, 7
  %v73 = vld [vmem:[%s72] ss:$0 sm:$0xff]
  %s74 = scalar_lea.vmem %s1, 14
  %75 = vst [vmem:[%s74] sm:$0x3] %v73
  %s76 = scalar_lea.vmem %s1, 38
  %77 = vst [vmem:[%s76] sm:$0x3] %v73
  %s78 = scalar_lea.vmem %s1, 62
  %79 = vst [vmem:[%s78] sm:$0x3] %v73
  %s80 = scalar_lea.vmem %s1, 86
  %81 = vst [vmem:[%s80] sm:$0x3] %v73
  %s82 = scalar_lea.vmem %s0, 8
  %v83 = vld [vmem:[%s82] ss:$0 sm:$0xff]
  %s84 = scalar_lea.vmem %s1, 16
  %85 = vst [vmem:[%s84] sm:$0x3] %v83
  %s86 = scalar_lea.vmem %s1, 40
  %87 = vst [vmem:[%s86] sm:$0x3] %v83
  %s88 = scalar_lea.vmem %s1, 64
  %89 = vst [vmem:[%s88] sm:$0x3] %v83
  %s90 = scalar_lea.vmem %s1, 88
  %91 = vst [vmem:[%s90] sm:$0x3] %v83
  %s92 = scalar_lea.vmem %s0, 8
  %s93 = scalar_lea.vmem %s92, 1
  %v94 = vld [vmem:[%s93] ss:$0 sm:$0xff]
  %s95 = scalar_lea.vmem %s1, 18
  %96 = vst [vmem:[%s95] sm:$0x3] %v94
  %s97 = scalar_lea.vmem %s1, 42
  %98 = vst [vmem:[%s97] sm:$0x3] %v94
  %s99 = scalar_lea.vmem %s1, 66
  %100 = vst [vmem:[%s99] sm:$0x3] %v94
  %s101 = scalar_lea.vmem %s1, 90
  %102 = vst [vmem:[%s101] sm:$0x3] %v94
  %s103 = scalar_lea.vmem %s0, 8
  %s104 = scalar_lea.vmem %s103, 2
  %v105 = vld [vmem:[%s104] ss:$0 sm:$0xff]
  %s106 = scalar_lea.vmem %s1, 20
  %107 = vst [vmem:[%s106] sm:$0x3] %v105
  %s108 = scalar_lea.vmem %s1, 44
  %109 = vst [vmem:[%s108] sm:$0x3] %v105
  %s110 = scalar_lea.vmem %s1, 68
  %111 = vst [vmem:[%s110] sm:$0x3] %v105
  %s112 = scalar_lea.vmem %s1, 92
  %113 = vst [vmem:[%s112] sm:$0x3] %v105
  %s114 = scalar_lea.vmem %s0, 8
  %s115 = scalar_lea.vmem %s114, 3
  %v116 = vld [vmem:[%s115] ss:$0 sm:$0xff]
  %s117 = scalar_lea.vmem %s1, 22
  %118 = vst [vmem:[%s117] sm:$0x3] %v116
  %s119 = scalar_lea.vmem %s1, 46
  %120 = vst [vmem:[%s119] sm:$0x3] %v116
  %s121 = scalar_lea.vmem %s1, 70
  %122 = vst [vmem:[%s121] sm:$0x3] %v116
  %s123 = scalar_lea.vmem %s1, 94
  %124 = vst [vmem:[%s123] sm:$0x3] %v116

// kernel: _lambda_.1
$region0: #{_lambda_.1}
  #allocation0 [shape = 'u32[]', space=smem, size = 0x4, offset = 0x4, fixed_abs, tag = 'smem constant byte address 0x4 - core index']
  #allocation1 [shape = 'u32[144,128]{1,0:T(1,128)}', space=vmem, size = 0x12000, scoped, tag = 'internal scratch']
  %s0 = inlined_call_operand.vmem [shape: bf16[4,128], index: 0, kind: input, shape index: {}]
  %s1 = inlined_call_operand.vmem [shape: bf16[128,256], index: 1, kind: input, shape index: {}]
  %s2 = inlined_call_operand.vmem [shape: bf16[256,256], index: 2, kind: input, shape index: {}]
  %s3 = inlined_call_operand.vmem [shape: f32[48,256], index: 3, kind: input, shape index: {}]
  %s4 = inlined_call_operand.vmem [shape: bf16[128,16], index: 4, kind: input, shape index: {}]
  %s5 = inlined_call_operand.vmem [shape: f32[2,1], index: 5, kind: output, shape index: {}]
  %s6 = sld [smem:[#allocation0]]
  $region30: #{_lambda_.1} parent=0
    _
  %s8 = ssub.s32 1, %s6
  %s9 = scalar_select 0, %s8, %s6
  // Predicated region
  $region2: #{_lambda_.1} parent=0 // pred_check
    _
  $region3: #{_lambda_.1} parent=0 // pred_check_branch
    %11 = sbr.rel (0) target = $region5
  $region4: #{_lambda_.1} parent=0 // pred_region
    _
  $region5: #{_lambda_.1} parent=0 // pred_fallthru
    _
  // Predicated region
  $region6: #{_lambda_.1} parent=0 // pred_check
    _
  $region7: #{_lambda_.1} parent=0 // pred_check_branch
    %13 = sbr.rel (0) target = $region9
  $region8: #{_lambda_.1} parent=0 // pred_region
    _
  $region9: #{_lambda_.1} parent=0 // pred_fallthru
    _
  // Predicated region
  $region10: #{_lambda_.1} parent=0 // pred_check
    _
  $region11: #{_lambda_.1} parent=0 // pred_check_branch
    %15 = sbr.rel (0) target = $region13
  $region12: #{_lambda_.1} parent=0 // pred_region
    _
  $region13: #{_lambda_.1} parent=0 // pred_fallthru
    _
  // Predicated region
  $region14: #{_lambda_.1} parent=0 // pred_check
    _
  $region15: #{_lambda_.1} parent=0 // pred_check_branch
    %17 = sbr.rel (0) target = $region17
  $region16: #{_lambda_.1} parent=0 // pred_region
    _
  $region17: #{_lambda_.1} parent=0 // pred_fallthru
    _
  // Predicated region
  $region18: #{_lambda_.1} parent=0 // pred_check
    _
  $region19: #{_lambda_.1} parent=0 // pred_check_branch
    %19 = sbr.rel (0) target = $region21
  $region20: #{_lambda_.1} parent=0 // pred_region
    _
  $region21: #{_lambda_.1} parent=0 // pred_fallthru
    _
  %v21 = vld [vmem:[%s0] sm:$0x3]
  %v22 = vld [vmem:[%s1] sm:$0xff]
  %v23 = vld [vmem:[%s1 + $0x8] sm:$0xff]
  %v24 = vld [vmem:[%s1 + $0x10] sm:$0xff]
  %v25 = vld [vmem:[%s1 + $0x18] sm:$0xff]
  %v26 = vld [vmem:[%s1 + $0x20] sm:$0xff]
  %v27 = vld [vmem:[%s1 + $0x28] sm:$0xff]
  %v28 = vld [vmem:[%s1 + $0x30] sm:$0xff]
  %v29 = vld [vmem:[%s1 + $0x38] sm:$0xff]
  %v30 = vld [vmem:[%s1 + $0x40] sm:$0xff]
  %v31 = vld [vmem:[%s1 + $0x48] sm:$0xff]
  %v32 = vld [vmem:[%s1 + $0x50] sm:$0xff]
  %v33 = vld [vmem:[%s1 + $0x58] sm:$0xff]
  %v34 = vld [vmem:[%s1 + $0x60] sm:$0xff]
  %v35 = vld [vmem:[%s1 + $0x68] sm:$0xff]
  %v36 = vld [vmem:[%s1 + $0x70] sm:$0xff]
  %v37 = vld [vmem:[%s1 + $0x78] sm:$0xff]
  %v54 = vunpack.c.l.b16 %v22
  %v55 = vunpack.c.h.b16 %v22
  %v56 = vunpack.c.l.b16 %v23
  %v57 = vunpack.c.h.b16 %v23
  %v58 = vunpack.c.l.b16 %v24
  %v59 = vunpack.c.h.b16 %v24
  %v60 = vunpack.c.l.b16 %v25
  %v61 = vunpack.c.h.b16 %v25
  %v62 = vunpack.c.l.b16 %v26
  %v63 = vunpack.c.h.b16 %v26
  %v64 = vunpack.c.l.b16 %v27
  %v65 = vunpack.c.h.b16 %v27
  %v66 = vunpack.c.l.b16 %v28
  %v67 = vunpack.c.h.b16 %v28
  %v68 = vunpack.c.l.b16 %v29
  %v69 = vunpack.c.h.b16 %v29
  %v70 = vunpack.c.l.b16 %v30
  %v71 = vunpack.c.h.b16 %v30
  %v72 = vunpack.c.l.b16 %v31
  %v73 = vunpack.c.h.b16 %v31
  %v74 = vunpack.c.l.b16 %v32
  %v75 = vunpack.c.h.b16 %v32
  %v76 = vunpack.c.l.b16 %v33
  %v77 = vunpack.c.h.b16 %v33
  %v78 = vunpack.c.l.b16 %v34
  %v79 = vunpack.c.h.b16 %v34
  %v80 = vunpack.c.l.b16 %v35
  %v81 = vunpack.c.h.b16 %v35
  %v82 = vunpack.c.l.b16 %v36
  %v83 = vunpack.c.h.b16 %v36
  %v84 = vunpack.c.l.b16 %v37
  %v85 = vunpack.c.h.b16 %v37
  %v86 = vpack.c.b16 %v56, %v54
  %v87 = vpack.c.b16 %v57, %v55
  %v88 = vpack.c.b16 %v60, %v58
  %v89 = vpack.c.b16 %v61, %v59
  %v90 = vpack.c.b16 %v64, %v62
  %v91 = vpack.c.b16 %v65, %v63
  %v92 = vpack.c.b16 %v68, %v66
  %v93 = vpack.c.b16 %v69, %v67
  %v94 = vpack.c.b16 %v72, %v70
  %v95 = vpack.c.b16 %v73, %v71
  %v96 = vpack.c.b16 %v76, %v74
  %v97 = vpack.c.b16 %v77, %v75
  %v98 = vpack.c.b16 %v80, %v78
  %v99 = vpack.c.b16 %v81, %v79
  %v100 = vpack.c.b16 %v84, %v82
  %v101 = vpack.c.b16 %v85, %v83
  %118 = vmatprep.subr.bf16.mxu0 %v87
  %119 = vmatpush1.bf16.msra.mxu0 %v86
  %120 = vmatprep.subr.bf16.mxu0 %v89
  %121 = vmatpush1.bf16.msra.mxu0 %v88
  %122 = vmatprep.subr.bf16.mxu0 %v91
  %123 = vmatpush1.bf16.msra.mxu0 %v90
  %124 = vmatprep.subr.bf16.mxu0 %v93
  %125 = vmatpush1.bf16.msra.mxu0 %v92
  %126 = vmatprep.subr.bf16.mxu0 %v95
  %127 = vmatpush1.bf16.msra.mxu0 %v94
  %128 = vmatprep.subr.bf16.mxu0 %v97
  %129 = vmatpush1.bf16.msra.mxu0 %v96
  %130 = vmatprep.subr.bf16.mxu0 %v99
  %131 = vmatpush1.bf16.msra.mxu0 %v98
  %132 = vmatprep.subr.bf16.mxu0 %v101
  %133 = vmatpush1.bf16.msra.mxu0 %v100
  %134 = vmatprep.subr.bf16.mxu0 0
  %135 = vmatpush1.bf16.msra.mxu0 0
  %136 = vmatprep.subr.bf16.mxu0 0
  %137 = vmatpush1.bf16.msra.mxu0 0
  %138 = vmatprep.subr.bf16.mxu0 0
  %139 = vmatpush1.bf16.msra.mxu0 0
  %140 = vmatprep.subr.bf16.mxu0 0
  %141 = vmatpush1.bf16.msra.mxu0 0
  %142 = vmatprep.subr.bf16.mxu0 0
  %143 = vmatpush1.bf16.msra.mxu0 0
  %144 = vmatprep.subr.bf16.mxu0 0
  %145 = vmatpush1.bf16.msra.mxu0 0
  %146 = vmatprep.subr.bf16.mxu0 0
  %147 = vmatpush1.bf16.msra.mxu0 0
  %148 = vmatprep.subr.bf16.mxu0 0
  %149 = vmatpush1.bf16.msra.mxu0 0
  %150 = vmatprep.mubr.bf16.mxu0 0
  %151 = vmatmul.mubr.bf16.gmra.mrb[0].mxu0 %v21
  %v152 = vpop.f32.mrb[0].mxu0
  %v153 = vadd.f32 0.0, %v152
  %v154 = vpop.f32.mrb[0].mxu0
  %v155 = vadd.f32 0.0, %v154
  %v156 = vpop.f32.mrb[0].mxu0
  %v157 = vpop.f32.mrb[0].mxu0
  %158 = vdwg.mxu0
  %v159 = vlaneseq
  %v160 = vshrl.u32 %v159, 7
  %v161 = vadd.s32 %v160, 8
  %v162 = vadd.s32 %v160, 16
  %v163 = vadd.s32 %v160, 24
  %v164 = vadd.s32 %v160, 32
  %v165 = vadd.s32 %v160, 40
  %v166 = vlaneseq
  %v167 = vand.u32 %v166, 127
  %v168 = vmul.u32 %v167, 12
  %vm169 = vcmp.ge.s32.totalorder %v160, %v168
  %vm170 = vcmp.ge.s32.totalorder %v161, %v168
  %vm171 = vcmp.ge.s32.totalorder %v162, %v168
  %vm172 = vcmp.ge.s32.totalorder %v163, %v168
  %vm173 = vcmp.ge.s32.totalorder %v164, %v168
  %vm174 = vcmp.ge.s32.totalorder %v165, %v168
  %v175 = vadd.s32 %v167, 1
  %v176 = vmul.u32 %v175, 12
  %vm177 = vcmp.lt.s32.totalorder %v160, %v176
  %vm178 = vcmp.lt.s32.totalorder %v161, %v176
  %vm179 = vcmp.lt.s32.totalorder %v162, %v176
  %vm180 = vcmp.lt.s32.totalorder %v163, %v176
  %vm181 = vcmp.lt.s32.totalorder %v164, %v176
  %vm182 = vcmp.lt.s32.totalorder %v165, %v176
  %vm183 = vmand %vm169, %vm177
  %vm184 = vmand %vm170, %vm178
  %vm185 = vmand %vm171, %vm179
  %vm186 = vmand %vm172, %vm180
  %vm187 = vmand %vm173, %vm181
  %vm188 = vmand %vm174, %vm182
  %v189 = vsel %vm183, 1, 0
  %v190 = vsel %vm184, 1, 0
  %v191 = vsel %vm185, 1, 0
  %v192 = vsel %vm186, 1, 0
  %v193 = vsel %vm187, 1, 0
  %v194 = vsel %vm188, 1, 0
  %v195 = vcvt.s32.f32 %v189
  %v196 = vcvt.s32.f32 %v190
  %v197 = vcvt.s32.f32 %v191
  %v198 = vcvt.s32.f32 %v192
  %v199 = vcvt.s32.f32 %v193
  %v200 = vcvt.s32.f32 %v194
  %vm201 = vcmask 31744
  %v203 = vsel %vm201, %v195, 0
  %v206 = vsel %vm201, %v196, 0
  %v209 = vsel %vm201, %v197, 0
  %v212 = vsel %vm201, %v198, 0
  %v215 = vsel %vm201, %v199, 0
  %v218 = vsel %vm201, %v200, 0
  %vm220 = vcmask 1043456
  %v222 = vsel %vm220, %v153, 0
  %v225 = vsel %vm220, %v155, 0
  %227 = vmatprep.subr.mxu0 %v225
  %228 = vmatpush1.msra.mxu0 %v222
  %229 = vmatprep.subr.mxu0 0.0
  %230 = vmatpush1.msra.mxu0 0.0
  %231 = vmatprep.subr.mxu0 0.0
  %232 = vmatpush1.msra.mxu0 0.0
  %233 = vmatprep.subr.mxu0 0.0
  %234 = vmatpush1.msra.mxu0 0.0
  %235 = vmatprep.subr.mxu0 0.0
  %236 = vmatpush1.msra.mxu0 0.0
  %237 = vmatprep.subr.mxu0 0.0
  %238 = vmatpush1.msra.mxu0 0.0
  %239 = vmatprep.subr.mxu0 0.0
  %240 = vmatpush1.msra.mxu0 0.0
  %241 = vmatprep.subr.mxu0 0.0
  %242 = vmatpush1.msra.mxu0 0.0
  %243 = vmatprep.subr.mxu0 0.0
  %244 = vmatpush1.msra.mxu0 0.0
  %245 = vmatprep.subr.mxu0 0.0
  %246 = vmatpush1.msra.mxu0 0.0
  %247 = vmatprep.subr.mxu0 0.0
  %248 = vmatpush1.msra.mxu0 0.0
  %249 = vmatprep.subr.mxu0 0.0
  %250 = vmatpush1.msra.mxu0 0.0
  %251 = vmatprep.subr.mxu0 0.0
  %252 = vmatpush1.msra.mxu0 0.0
  %253 = vmatprep.subr.mxu0 0.0
  %254 = vmatpush1.msra.mxu0 0.0
  %255 = vmatprep.subr.mxu0 0.0
  %256 = vmatpush1.msra.mxu0 0.0
  %257 = vmatprep.subr.mxu0 0.0
  %258 = vmatpush1.msra.mxu0 0.0
  %259 = vmatprep.subr.mxu0 0.0
  %260 = vmatpush1.msra.mxu0 0.0
  %261 = vmatprep.subr.mxu0 0.0
  %262 = vmatpush1.msra.mxu0 0.0
  %263 = vmatprep.subr.mxu0 0.0
  %264 = vmatpush1.msra.mxu0 0.0
  %265 = vmatprep.subr.mxu0 0.0
  %266 = vmatpush1.msra.mxu0 0.0
  %267 = vmatprep.subr.mxu0 0.0
  %268 = vmatpush1.msra.mxu0 0.0
  %269 = vmatprep.subr.mxu0 0.0
  %270 = vmatpush1.msra.mxu0 0.0
  %271 = vmatprep.subr.mxu0 0.0
  %272 = vmatpush1.msra.mxu0 0.0
  %273 = vmatprep.subr.mxu0 0.0
  %274 = vmatpush1.msra.mxu0 0.0
  %275 = vmatprep.subr.mxu0 0.0
  %276 = vmatpush1.msra.mxu0 0.0
  %277 = vmatprep.subr.mxu0 0.0
  %278 = vmatpush1.msra.mxu0 0.0
  %279 = vmatprep.subr.mxu0 0.0
  %280 = vmatpush1.msra.mxu0 0.0
  %281 = vmatprep.subr.mxu0 0.0
  %282 = vmatpush1.msra.mxu0 0.0
  %283 = vmatprep.subr.mxu0 0.0
  %284 = vmatpush1.msra.mxu0 0.0
  %285 = vmatprep.subr.mxu0 0.0
  %286 = vmatpush1.msra.mxu0 0.0
  %287 = vmatprep.subr.mxu0 0.0
  %288 = vmatpush1.msra.mxu0 0.0
  %289 = vmatprep.subr.mxu0 0.0
  %290 = vmatpush1.msra.mxu0 0.0
  %291 = vmatprep.mubr.f32.mxu0 0.0
  %292 = vmatmul.mubr.f32.gmra.mrb[0].mxu0 %v203
  %v293 = vpop.f32.mrb[0].mxu0
  %v294 = vadd.f32 0.0, %v293
  %v295 = vpop.f32.mrb[0].mxu0
  %v296 = vadd.f32 0.0, %v295
  %297 = vmatprep.mubr.f32.mxu0 0.0
  %298 = vmatmul.mubr.f32.gmra.mrb[0].mxu0 %v206
  %v299 = vpop.f32.mrb[0].mxu0
  %v300 = vadd.f32 0.0, %v299
  %v301 = vpop.f32.mrb[0].mxu0
  %v302 = vadd.f32 0.0, %v301
  %303 = vmatprep.mubr.f32.mxu0 0.0
  %304 = vmatmul.mubr.f32.gmra.mrb[0].mxu0 %v209
  %v305 = vpop.f32.mrb[0].mxu0
  %v306 = vadd.f32 0.0, %v305
  %v307 = vpop.f32.mrb[0].mxu0
  %v308 = vadd.f32 0.0, %v307
  %309 = vmatprep.mubr.f32.mxu0 0.0
  %310 = vmatmul.mubr.f32.gmra.mrb[0].mxu0 %v212
  %v311 = vpop.f32.mrb[0].mxu0
  %v312 = vadd.f32 0.0, %v311
  %v313 = vpop.f32.mrb[0].mxu0
  %v314 = vadd.f32 0.0, %v313
  %315 = vmatprep.mubr.f32.mxu0 0.0
  %316 = vmatmul.mubr.f32.gmra.mrb[0].mxu0 %v215
  %v317 = vpop.f32.mrb[0].mxu0
  %v318 = vadd.f32 0.0, %v317
  %v319 = vpop.f32.mrb[0].mxu0
  %v320 = vadd.f32 0.0, %v319
  %321 = vmatprep.mubr.f32.mxu0 0.0
  %322 = vmatmul.mubr.f32.gmra.mrb[0].mxu0 %v218
  %v323 = vpop.f32.mrb[0].mxu0
  %v324 = vadd.f32 0.0, %v323
  %v325 = vpop.f32.mrb[0].mxu0
  %v326 = vadd.f32 0.0, %v325
  %327 = vdwg.mxu0
  %v328 = vld [vmem:[%s3] sm:$0xff]
  %v329 = vld [vmem:[%s3 + $0x8] sm:$0xff]
  %v330 = vld [vmem:[%s3 + $0x10] sm:$0xff]
  %v331 = vld [vmem:[%s3 + $0x18] sm:$0xff]
  %v332 = vld [vmem:[%s3 + $0x20] sm:$0xff]
  %v333 = vld [vmem:[%s3 + $0x28] sm:$0xff]
  %v334 = vld [vmem:[%s3 + $0x30] sm:$0xff]
  %v335 = vld [vmem:[%s3 + $0x38] sm:$0xff]
  %v336 = vld [vmem:[%s3 + $0x40] sm:$0xff]
  %v337 = vld [vmem:[%s3 + $0x48] sm:$0xff]
  %v338 = vld [vmem:[%s3 + $0x50] sm:$0xff]
  %v339 = vld [vmem:[%s3 + $0x58] sm:$0xff]
  %v340 = vmul.f32 %v294, %v328
  %v341 = vmul.f32 %v296, %v329
  %v342 = vmul.f32 %v300, %v330
  %v343 = vmul.f32 %v302, %v331
  %v344 = vmul.f32 %v306, %v332
  %v345 = vmul.f32 %v308, %v333
  %v346 = vmul.f32 %v312, %v334
  %v347 = vmul.f32 %v314, %v335
  %v348 = vmul.f32 %v318, %v336
  %v349 = vmul.f32 %v320, %v337
  %v350 = vmul.f32 %v324, %v338
  %v351 = vmul.f32 %v326, %v339
  %v352 = vpack.c.bf16 %v342, %v340
  %v353 = vpack.c.bf16 %v343, %v341
  %v354 = vpack.c.bf16 %v346, %v344
  %v355 = vpack.c.bf16 %v347, %v345
  %v356 = vpack.c.bf16 %v350, %v348
  %v357 = vpack.c.bf16 %v351, %v349
  %v358 = vld [vmem:[%s2] sm:$0xff]
  %v359 = vld [vmem:[%s2 + $0x8] sm:$0xff]
  %v360 = vld [vmem:[%s2 + $0x10] sm:$0xff]
  %v361 = vld [vmem:[%s2 + $0x18] sm:$0xff]
  %v362 = vld [vmem:[%s2 + $0x20] sm:$0xff]
  %v363 = vld [vmem:[%s2 + $0x28] sm:$0xff]
  %v364 = vld [vmem:[%s2 + $0x30] sm:$0xff]
  %v365 = vld [vmem:[%s2 + $0x38] sm:$0xff]
  %v366 = vld [vmem:[%s2 + $0x40] sm:$0xff]
  %v367 = vld [vmem:[%s2 + $0x48] sm:$0xff]
  %v368 = vld [vmem:[%s2 + $0x50] sm:$0xff]
  %v369 = vld [vmem:[%s2 + $0x58] sm:$0xff]
  %v370 = vld [vmem:[%s2 + $0x60] sm:$0xff]
  %v371 = vld [vmem:[%s2 + $0x68] sm:$0xff]
  %v372 = vld [vmem:[%s2 + $0x70] sm:$0xff]
  %v373 = vld [vmem:[%s2 + $0x78] sm:$0xff]
  %v374 = vld [vmem:[%s2 + $0x80] sm:$0xff]
  %v375 = vld [vmem:[%s2 + $0x88] sm:$0xff]
  %v376 = vld [vmem:[%s2 + $0x90] sm:$0xff]
  %v377 = vld [vmem:[%s2 + $0x98] sm:$0xff]
  %v378 = vld [vmem:[%s2 + $0xa0] sm:$0xff]
  %v379 = vld [vmem:[%s2 + $0xa8] sm:$0xff]
  %v380 = vld [vmem:[%s2 + $0xb0] sm:$0xff]
  %v381 = vld [vmem:[%s2 + $0xb8] sm:$0xff]
  %v382 = vld [vmem:[%s2 + $0xc0] sm:$0xff]
  %v383 = vld [vmem:[%s2 + $0xc8] sm:$0xff]
  %v384 = vld [vmem:[%s2 + $0xd0] sm:$0xff]
  %v385 = vld [vmem:[%s2 + $0xd8] sm:$0xff]
  %v386 = vld [vmem:[%s2 + $0xe0] sm:$0xff]
  %v387 = vld [vmem:[%s2 + $0xe8] sm:$0xff]
  %v388 = vld [vmem:[%s2 + $0xf0] sm:$0xff]
  %v389 = vld [vmem:[%s2 + $0xf8] sm:$0xff]
  %v422 = vunpack.c.l.b16 %v358
  %v423 = vunpack.c.h.b16 %v358
  %v424 = vunpack.c.l.b16 %v359
  %v425 = vunpack.c.h.b16 %v359
  %v426 = vunpack.c.l.b16 %v360
  %v427 = vunpack.c.h.b16 %v360
  %v428 = vunpack.c.l.b16 %v361
  %v429 = vunpack.c.h.b16 %v361
  %v430 = vunpack.c.l.b16 %v362
  %v431 = vunpack.c.h.b16 %v362
  %v432 = vunpack.c.l.b16 %v363
  %v433 = vunpack.c.h.b16 %v363
  %v434 = vunpack.c.l.b16 %v364
  %v435 = vunpack.c.h.b16 %v364
  %v436 = vunpack.c.l.b16 %v365
  %v437 = vunpack.c.h.b16 %v365
  %v438 = vunpack.c.l.b16 %v366
  %v439 = vunpack.c.h.b16 %v366
  %v440 = vunpack.c.l.b16 %v367
  %v441 = vunpack.c.h.b16 %v367
  %v442 = vunpack.c.l.b16 %v368
  %v443 = vunpack.c.h.b16 %v368
  %v444 = vunpack.c.l.b16 %v369
  %v445 = vunpack.c.h.b16 %v369
  %v446 = vunpack.c.l.b16 %v370
  %v447 = vunpack.c.h.b16 %v370
  %v448 = vunpack.c.l.b16 %v371
  %v449 = vunpack.c.h.b16 %v371
  %v450 = vunpack.c.l.b16 %v372
  %v451 = vunpack.c.h.b16 %v372
  %v452 = vunpack.c.l.b16 %v373
  %v453 = vunpack.c.h.b16 %v373
  %v454 = vunpack.c.l.b16 %v374
  %v455 = vunpack.c.h.b16 %v374
  %v456 = vunpack.c.l.b16 %v375
  %v457 = vunpack.c.h.b16 %v375
  %v458 = vunpack.c.l.b16 %v376
  %v459 = vunpack.c.h.b16 %v376
  %v460 = vunpack.c.l.b16 %v377
  %v461 = vunpack.c.h.b16 %v377
  %v462 = vunpack.c.l.b16 %v378
  %v463 = vunpack.c.h.b16 %v378
  %v464 = vunpack.c.l.b16 %v379
  %v465 = vunpack.c.h.b16 %v379
  %v466 = vunpack.c.l.b16 %v380
  %v467 = vunpack.c.h.b16 %v380
  %v468 = vunpack.c.l.b16 %v381
  %v469 = vunpack.c.h.b16 %v381
  %v470 = vunpack.c.l.b16 %v382
  %v471 = vunpack.c.h.b16 %v382
  %v472 = vunpack.c.l.b16 %v383
  %v473 = vunpack.c.h.b16 %v383
  %v474 = vunpack.c.l.b16 %v384
  %v475 = vunpack.c.h.b16 %v384
  %v476 = vunpack.c.l.b16 %v385
  %v477 = vunpack.c.h.b16 %v385
  %v478 = vunpack.c.l.b16 %v386
  %v479 = vunpack.c.h.b16 %v386
  %v480 = vunpack.c.l.b16 %v387
  %v481 = vunpack.c.h.b16 %v387
  %v482 = vunpack.c.l.b16 %v388
  %v483 = vunpack.c.h.b16 %v388
  %v484 = vunpack.c.l.b16 %v389
  %v485 = vunpack.c.h.b16 %v389
  %v486 = vpack.c.b16 %v424, %v422
  %v487 = vpack.c.b16 %v425, %v423
  %v488 = vpack.c.b16 %v428, %v426
  %v489 = vpack.c.b16 %v429, %v427
  %v490 = vpack.c.b16 %v432, %v430
  %v491 = vpack.c.b16 %v433, %v431
  %v492 = vpack.c.b16 %v436, %v434
  %v493 = vpack.c.b16 %v437, %v435
  %v494 = vpack.c.b16 %v440, %v438
  %v495 = vpack.c.b16 %v441, %v439
  %v496 = vpack.c.b16 %v444, %v442
  %v497 = vpack.c.b16 %v445, %v443
  %v498 = vpack.c.b16 %v448, %v446
  %v499 = vpack.c.b16 %v449, %v447
  %v500 = vpack.c.b16 %v452, %v450
  %v501 = vpack.c.b16 %v453, %v451
  %v502 = vpack.c.b16 %v456, %v454
  %v503 = vpack.c.b16 %v457, %v455
  %v504 = vpack.c.b16 %v460, %v458
  %v505 = vpack.c.b16 %v461, %v459
  %v506 = vpack.c.b16 %v464, %v462
  %v507 = vpack.c.b16 %v465, %v463
  %v508 = vpack.c.b16 %v468, %v466
  %v509 = vpack.c.b16 %v469, %v467
  %v510 = vpack.c.b16 %v472, %v470
  %v511 = vpack.c.b16 %v473, %v471
  %v512 = vpack.c.b16 %v476, %v474
  %v513 = vpack.c.b16 %v477, %v475
  %v514 = vpack.c.b16 %v480, %v478
  %v515 = vpack.c.b16 %v481, %v479
  %v516 = vpack.c.b16 %v484, %v482
  %v517 = vpack.c.b16 %v485, %v483
  %550 = vmatprep.subr.bf16.mxu0 %v487
  %551 = vmatpush1.bf16.msra.mxu0 %v486
  %552 = vmatprep.subr.bf16.mxu0 %v489
  %553 = vmatpush1.bf16.msra.mxu0 %v488
  %554 = vmatprep.subr.bf16.mxu0 %v491
  %555 = vmatpush1.bf16.msra.mxu0 %v490
  %556 = vmatprep.subr.bf16.mxu0 %v493
  %557 = vmatpush1.bf16.msra.mxu0 %v492
  %558 = vmatprep.subr.bf16.mxu0 %v495
  %559 = vmatpush1.bf16.msra.mxu0 %v494
  %560 = vmatprep.subr.bf16.mxu0 %v497
  %561 = vmatpush1.bf16.msra.mxu0 %v496
  %562 = vmatprep.subr.bf16.mxu0 %v499
  %563 = vmatpush1.bf16.msra.mxu0 %v498
  %564 = vmatprep.subr.bf16.mxu0 %v501
  %565 = vmatpush1.bf16.msra.mxu0 %v500
  %566 = vmatprep.subr.bf16.mxu0 %v503
  %567 = vmatpush1.bf16.msra.mxu0 %v502
  %568 = vmatprep.subr.bf16.mxu0 %v505
  %569 = vmatpush1.bf16.msra.mxu0 %v504
  %570 = vmatprep.subr.bf16.mxu0 %v507
  %571 = vmatpush1.bf16.msra.mxu0 %v506
  %572 = vmatprep.subr.bf16.mxu0 %v509
  %573 = vmatpush1.bf16.msra.mxu0 %v508
  %574 = vmatprep.subr.bf16.mxu0 %v511
  %575 = vmatpush1.bf16.msra.mxu0 %v510
  %576 = vmatprep.subr.bf16.mxu0 %v513
  %577 = vmatpush1.bf16.msra.mxu0 %v512
  %578 = vmatprep.subr.bf16.mxu0 %v515
  %579 = vmatpush1.bf16.msra.mxu0 %v514
  %580 = vmatprep.subr.bf16.mxu0 %v517
  %581 = vmatpush1.bf16.msra.mxu0 %v516
  %582 = vmatprep.mubr.bf16.mxu0 %v353
  %583 = vmatmul.mubr.bf16.gmra.mrb[0].mxu0 %v352
  %v584 = vpop.f32.mrb[0].mxu0
  %v585 = vadd.f32 0.0, %v584
  %v586 = vpop.f32.mrb[0].mxu0
  %v587 = vadd.f32 0.0, %v586
  %v588 = vpop.f32.mrb[0].mxu0
  %v589 = vadd.f32 0.0, %v588
  %v590 = vpop.f32.mrb[0].mxu0
  %v591 = vadd.f32 0.0, %v590
  %592 = vmatprep.mubr.bf16.mxu0 %v355
  %593 = vmatmul.mubr.bf16.gmra.mrb[0].mxu0 %v354
  %v594 = vpop.f32.mrb[0].mxu0
  %v595 = vadd.f32 0.0, %v594
  %v596 = vpop.f32.mrb[0].mxu0
  %v597 = vadd.f32 0.0, %v596
  %v598 = vpop.f32.mrb[0].mxu0
  %v599 = vadd.f32 0.0, %v598
  %v600 = vpop.f32.mrb[0].mxu0
  %v601 = vadd.f32 0.0, %v600
  %602 = vmatprep.mubr.bf16.mxu0 %v357
  %603 = vmatmul.mubr.bf16.gmra.mrb[0].mxu0 %v356
  %v604 = vpop.f32.mrb[0].mxu0
  %v605 = vadd.f32 0.0, %v604
  %v606 = vpop.f32.mrb[0].mxu0
  %v607 = vadd.f32 0.0, %v606
  %v608 = vpop.f32.mrb[0].mxu0
  %v609 = vadd.f32 0.0, %v608
  %v610 = vpop.f32.mrb[0].mxu0
  %v611 = vadd.f32 0.0, %v610
  %612 = vdwg.mxu0
  %v613 = vmul.f32 %v585, %v585
  %v614 = vmul.f32 %v589, %v589
  %v615 = vmul.f32 %v595, %v595
  %v616 = vmul.f32 %v599, %v599
  %v617 = vmul.f32 %v605, %v605
  %v618 = vmul.f32 %v609, %v609
  %v619 = vmul.f32 %v587, %v587
  %v620 = vmul.f32 %v591, %v591
  %v621 = vmul.f32 %v597, %v597
  %v622 = vmul.f32 %v601, %v601
  %v623 = vmul.f32 %v607, %v607
  %v624 = vmul.f32 %v611, %v611
  %v625 = vadd.f32 %v613, %v619
  %v626 = vadd.f32 %v614, %v620
  %v627 = vadd.f32 %v615, %v621
  %v628 = vadd.f32 %v616, %v622
  %v629 = vadd.f32 %v617, %v623
  %v630 = vadd.f32 %v618, %v624
  %v631 = vadd.f32 %v625, 1e-12
  %v632 = vadd.f32 %v626, 1e-12
  %v633 = vadd.f32 %v627, 1e-12
  %v634 = vadd.f32 %v628, 1e-12
  %v635 = vadd.f32 %v629, 1e-12
  %v636 = vadd.f32 %v630, 1e-12
  %v637 = vrsqrt.pop %v631
  %v638 = vmul.f32 %v631, %v637
  %vm639 = vcmp.eq.f32.partialorder %v631, inf
  %v640 = vsel %vm639, %v631, %v638
  %vm641 = vcmp.eq.f32.partialorder %v631, 0.0
  %v642 = vand.u32 %v631, 2147483648
  %v643 = vsel %vm641, %v642, %v640
  %v644 = vrsqrt.pop %v632
  %v645 = vmul.f32 %v632, %v644
  %vm646 = vcmp.eq.f32.partialorder %v632, inf
  %v647 = vsel %vm646, %v632, %v645
  %vm648 = vcmp.eq.f32.partialorder %v632, 0.0
  %v649 = vand.u32 %v632, 2147483648
  %v650 = vsel %vm648, %v649, %v647
  %v651 = vrsqrt.pop %v633
  %v652 = vmul.f32 %v633, %v651
  %vm653 = vcmp.eq.f32.partialorder %v633, inf
  %v654 = vsel %vm653, %v633, %v652
  %vm655 = vcmp.eq.f32.partialorder %v633, 0.0
  %v656 = vand.u32 %v633, 2147483648
  %v657 = vsel %vm655, %v656, %v654
  %v658 = vrsqrt.pop %v634
  %v659 = vmul.f32 %v634, %v658
  %vm660 = vcmp.eq.f32.partialorder %v634, inf
  %v661 = vsel %vm660, %v634, %v659
  %vm662 = vcmp.eq.f32.partialorder %v634, 0.0
  %v663 = vand.u32 %v634, 2147483648
  %v664 = vsel %vm662, %v663, %v661
  %v665 = vrsqrt.pop %v635
  %v666 = vmul.f32 %v635, %v665
  %vm667 = vcmp.eq.f32.partialorder %v635, inf
  %v668 = vsel %vm667, %v635, %v666
  %vm669 = vcmp.eq.f32.partialorder %v635, 0.0
  %v670 = vand.u32 %v635, 2147483648
  %v671 = vsel %vm669, %v670, %v668
  %v672 = vrsqrt.pop %v636
  %v673 = vmul.f32 %v636, %v672
  %vm674 = vcmp.eq.f32.partialorder %v636, inf
  %v675 = vsel %vm674, %v636, %v673
  %vm676 = vcmp.eq.f32.partialorder %v636, 0.0
  %v677 = vand.u32 %v636, 2147483648
  %v678 = vsel %vm676, %v677, %v675
  %v679 = vpack.c.bf16 %v650, %v643
  %v680 = vpack.c.bf16 %v664, %v657
  %v681 = vpack.c.bf16 %v678, %v671
  %v682 = vld [vmem:[%s4] sm:$0xf]
  %v683 = vld [vmem:[%s4 + $0x4] sm:$0xf]
  %v684 = vld [vmem:[%s4 + $0x8] sm:$0xf]
  %v685 = vld [vmem:[%s4 + $0xc] sm:$0xf]
  %v686 = vld [vmem:[%s4 + $0x10] sm:$0xf]
  %v687 = vld [vmem:[%s4 + $0x14] sm:$0xf]
  %v688 = vld [vmem:[%s4 + $0x18] sm:$0xf]
  %v689 = vld [vmem:[%s4 + $0x1c] sm:$0xf]
  %v690 = vld [vmem:[%s4 + $0x20] sm:$0xf]
  %v691 = vld [vmem:[%s4 + $0x24] sm:$0xf]
  %v692 = vld [vmem:[%s4 + $0x28] sm:$0xf]
  %v693 = vld [vmem:[%s4 + $0x2c] sm:$0xf]
  %v694 = vld [vmem:[%s4 + $0x30] sm:$0xf]
  %v695 = vld [vmem:[%s4 + $0x34] sm:$0xf]
  %v696 = vld [vmem:[%s4 + $0x38] sm:$0xf]
  %v697 = vld [vmem:[%s4 + $0x3c] sm:$0xf]
  %v714 = vunpack.c.l.b16 %v682
  %v715 = vunpack.c.l.b16 %v683
  %v716 = vunpack.c.l.b16 %v684
  %v717 = vunpack.c.l.b16 %v685
  %v718 = vunpack.c.l.b16 %v686
  %v719 = vunpack.c.l.b16 %v687
  %v720 = vunpack.c.l.b16 %v688
  %v721 = vunpack.c.l.b16 %v689
  %v722 = vunpack.c.l.b16 %v690
  %v723 = vunpack.c.l.b16 %v691
  %v724 = vunpack.c.l.b16 %v692
  %v725 = vunpack.c.l.b16 %v693
  %v726 = vunpack.c.l.b16 %v694
  %v727 = vunpack.c.l.b16 %v695
  %v728 = vunpack.c.l.b16 %v696
  %v729 = vunpack.c.l.b16 %v697
  %v730 = vpack.c.b16 %v715, %v714
  %v731 = vpack.c.b16 %v717, %v716
  %v732 = vpack.c.b16 %v719, %v718
  %v733 = vpack.c.b16 %v721, %v720
  %v734 = vpack.c.b16 %v723, %v722
  %v735 = vpack.c.b16 %v725, %v724
  %v736 = vpack.c.b16 %v727, %v726
  %v737 = vpack.c.b16 %v729, %v728
  %746 = vmatprep.subr.bf16.mxu0 0
  %747 = vmatpush1.bf16.msra.mxu0 %v730
  %748 = vmatprep.subr.bf16.mxu0 0
  %749 = vmatpush1.bf16.msra.mxu0 %v731
  %750 = vmatprep.subr.bf16.mxu0 0
  %751 = vmatpush1.bf16.msra.mxu0 %v732
  %752 = vmatprep.subr.bf16.mxu0 0
  %753 = vmatpush1.bf16.msra.mxu0 %v733
  %754 = vmatprep.subr.bf16.mxu0 0
  %755 = vmatpush1.bf16.msra.mxu0 %v734
  %756 = vmatprep.subr.bf16.mxu0 0
  %757 = vmatpush1.bf16.msra.mxu0 %v735
  %758 = vmatprep.subr.bf16.mxu0 0
  %759 = vmatpush1.bf16.msra.mxu0 %v736
  %760 = vmatprep.subr.bf16.mxu0 0
  %761 = vmatpush1.bf16.msra.mxu0 %v737
  %762 = vmatprep.subr.bf16.mxu0 0
  %763 = vmatpush1.bf16.msra.mxu0 0
  %764 = vmatprep.subr.bf16.mxu0 0
  %765 = vmatpush1.bf16.msra.mxu0 0
  %766 = vmatprep.subr.bf16.mxu0 0
  %767 = vmatpush1.bf16.msra.mxu0 0
  %768 = vmatprep.subr.bf16.mxu0 0
  %769 = vmatpush1.bf16.msra.mxu0 0
  %770 = vmatprep.subr.bf16.mxu0 0
  %771 = vmatpush1.bf16.msra.mxu0 0
  %772 = vmatprep.subr.bf16.mxu0 0
  %773 = vmatpush1.bf16.msra.mxu0 0
  %774 = vmatprep.subr.bf16.mxu0 0
  %775 = vmatpush1.bf16.msra.mxu0 0
  %776 = vmatprep.subr.bf16.mxu0 0
  %777 = vmatpush1.bf16.msra.mxu0 0
  %778 = vmatprep.mubr.bf16.mxu0 0
  %779 = vmatmul.mubr.bf16.gmra.mrb[0].mxu0 %v679
  %v780 = vpop.f32.mrb[0].mxu0
  %v781 = vadd.f32 0.0, %v780
  %v782 = vpop.f32.mrb[0].mxu0
  %v783 = vpop.f32.mrb[0].mxu0
  %v784 = vadd.f32 0.0, %v783
  %v785 = vpop.f32.mrb[0].mxu0
  %786 = vmatprep.mubr.bf16.mxu0 0
  %787 = vmatmul.mubr.bf16.gmra.mrb[0].mxu0 %v680
  %v788 = vpop.f32.mrb[0].mxu0
  %v789 = vadd.f32 0.0, %v788
  %v790 = vpop.f32.mrb[0].mxu0
  %v791 = vpop.f32.mrb[0].mxu0
  %v792 = vadd.f32 0.0, %v791
  %v793 = vpop.f32.mrb[0].mxu0
  %794 = vmatprep.mubr.bf16.mxu0 0
  %795 = vmatmul.mubr.bf16.gmra.mrb[0].mxu0 %v681
  %v796 = vpop.f32.mrb[0].mxu0
  %v797 = vadd.f32 0.0, %v796
  %v798 = vpop.f32.mrb[0].mxu0
  %v799 = vpop.f32.mrb[0].mxu0
  %v800 = vadd.f32 0.0, %v799
  %v801 = vpop.f32.mrb[0].mxu0
  %802 = vdwg.mxu0
  %v803 = vsub.f32 %v792, %v781
  %v804 = vsub.f32 %v797, %v784
  %v805 = vsub.f32 %v800, %v789
  %v806 = vmul.f32 %v803, %v803
  %v807 = vmul.f32 %v804, %v804
  %v808 = vmul.f32 %v805, %v805
  %v809 = vmul.u32 %v160, 12
  %vm810 = vcmp.ge.s32.totalorder %v167, %v809
  %v811 = vadd.s32 %v160, 1
  %v812 = vmul.u32 %v811, 12
  %vm813 = vcmp.lt.s32.totalorder %v167, %v812
  %vm814 = vmand %vm810, %vm813
  %v815 = vsel %vm814, 1, 0
  %v816 = vcvt.s32.f32 %v815
  %vm817 = vcmask 195584
  %v819 = vsel %vm817, %v816, 0
  %821 = vmatprep.subr.mxu0 0.0
  %822 = vmatpush1.msra.mxu0 %v806
  %823 = vmatprep.subr.mxu0 0.0
  %824 = vmatpush1.msra.mxu0 %v807
  %825 = vmatprep.subr.mxu0 0.0
  %826 = vmatpush1.msra.mxu0 %v808
  %827 = vmatprep.subr.mxu0 0.0
  %828 = vmatpush1.msra.mxu0 0.0
  %829 = vmatprep.subr.mxu0 0.0
  %830 = vmatpush1.msra.mxu0 0.0
  %831 = vmatprep.subr.mxu0 0.0
  %832 = vmatpush1.msra.mxu0 0.0
  %833 = vmatprep.subr.mxu0 0.0
  %834 = vmatpush1.msra.mxu0 0.0
  %835 = vmatprep.subr.mxu0 0.0
  %836 = vmatpush1.msra.mxu0 0.0
  %837 = vmatprep.subr.mxu0 0.0
  %838 = vmatpush1.msra.mxu0 0.0
  %839 = vmatprep.subr.mxu0 0.0
  %840 = vmatpush1.msra.mxu0 0.0
  %841 = vmatprep.subr.mxu0 0.0
  %842 = vmatpush1.msra.mxu0 0.0
  %843 = vmatprep.subr.mxu0 0.0
  %844 = vmatpush1.msra.mxu0 0.0
  %845 = vmatprep.subr.mxu0 0.0
  %846 = vmatpush1.msra.mxu0 0.0
  %847 = vmatprep.subr.mxu0 0.0
  %848 = vmatpush1.msra.mxu0 0.0
  %849 = vmatprep.subr.mxu0 0.0
  %850 = vmatpush1.msra.mxu0 0.0
  %851 = vmatprep.subr.mxu0 0.0
  %852 = vmatpush1.msra.mxu0 0.0
  %853 = vmatprep.subr.mxu0 0.0
  %854 = vmatpush1.msra.mxu0 0.0
  %855 = vmatprep.subr.mxu0 0.0
  %856 = vmatpush1.msra.mxu0 0.0
  %857 = vmatprep.subr.mxu0 0.0
  %858 = vmatpush1.msra.mxu0 0.0
  %859 = vmatprep.subr.mxu0 0.0
  %860 = vmatpush1.msra.mxu0 0.0
  %861 = vmatprep.subr.mxu0 0.0
  %862 = vmatpush1.msra.mxu0 0.0
  %863 = vmatprep.subr.mxu0 0.0
  %864 = vmatpush1.msra.mxu0 0.0
  %865 = vmatprep.subr.mxu0 0.0
  %866 = vmatpush1.msra.mxu0 0.0
  %867 = vmatprep.subr.mxu0 0.0
  %868 = vmatpush1.msra.mxu0 0.0
  %869 = vmatprep.subr.mxu0 0.0
  %870 = vmatpush1.msra.mxu0 0.0
  %871 = vmatprep.subr.mxu0 0.0
  %872 = vmatpush1.msra.mxu0 0.0
  %873 = vmatprep.subr.mxu0 0.0
  %874 = vmatpush1.msra.mxu0 0.0
  %875 = vmatprep.subr.mxu0 0.0
  %876 = vmatpush1.msra.mxu0 0.0
  %877 = vmatprep.subr.mxu0 0.0
  %878 = vmatpush1.msra.mxu0 0.0
  %879 = vmatprep.subr.mxu0 0.0
  %880 = vmatpush1.msra.mxu0 0.0
  %881 = vmatprep.subr.mxu0 0.0
  %882 = vmatpush1.msra.mxu0 0.0
  %883 = vmatprep.subr.mxu0 0.0
  %884 = vmatpush1.msra.mxu0 0.0
  %885 = vmatprep.mubr.f32.mxu0 0.0
  %886 = vmatmul.mubr.f32.gmra.mrb[0].mxu0 %v819
  %v887 = vpop.f32.mrb[0].mxu0
  %v888 = vadd.f32 0.0, %v887
  %v889 = vpop.f32.mrb[0].mxu0
  %890 = vdwg.mxu0
  %vm891 = vcmask 123904
  %v892 = vsel %vm891, %v888, 0.0
  %893 = vadd.xlane.f32.xlu0 %v892
  %v894 = vpop.xlane.xlu0 %893
  %vm895 = vcmask 1024
  %896 = vst.msk [vmem:[%s5] sm:$0x3] %vm895, %v894
  // Predicated region
  $region22: #{_lambda_.1} parent=0 // pred_check
    _
  $region23: #{_lambda_.1} parent=0 // pred_check_branch
    %898 = sbr.rel (0) target = $region25
  $region24: #{_lambda_.1} parent=0 // pred_region
    _
  $region25: #{_lambda_.1} parent=0 // pred_fallthru
    _
  // Predicated region
  $region26: #{_lambda_.1} parent=0 // pred_check
    _
  $region27: #{_lambda_.1} parent=0 // pred_check_branch
    %900 = sbr.rel (0) target = $region29
  $region28: #{_lambda_.1} parent=0 // pred_region
    _
  $region29: #{_lambda_.1} parent=0 // pred_fallthru
    _

</llo_original>
